<compile_context>
chip_gen: v6e
topology: v6e:2x2x1
jax: 0.10.0
libtpu: 0.0.40
codegen_flags: <defaults>
</compile_context>

<pallas_src>
import functools

import jax
import jax.numpy as jnp
from jax.experimental import pallas as pl
from jax.experimental.pallas import tpu as pltpu


def _vq_loss_kernel(logits_ref, tgt_ref, z_ref, zq_ref, out_ref,
                    ce_acc, se_acc, *, commitment_cost, n_total, z_total):
    b = pl.program_id(0)
    t = pl.program_id(1)
    last_b = pl.num_programs(0) - 1
    last_t = pl.num_programs(1) - 1

    @pl.when((b == 0) & (t == 0))
    def _init():
        ce_acc[...] = jnp.zeros_like(ce_acc)
        se_acc[...] = jnp.zeros_like(se_acc)

    # ---- cross-entropy on this (C, TILE_T) tile ----------------------------
    logits = logits_ref[0].astype(jnp.float32)            # (C, TILE_T)
    tgt = tgt_ref[0]                                       # (1, TILE_T) int32
    n_cls, tile_t = logits.shape

    col_max = jnp.max(logits, axis=0, keepdims=True)       # (1, TILE_T)
    lse = col_max + jnp.log(
        jnp.sum(jnp.exp(logits - col_max), axis=0, keepdims=True))
    cls_ids = jax.lax.broadcasted_iota(jnp.int32, (n_cls, tile_t), 0)
    # No materialized one-hot: select-then-reduce along the class (sublane) axis.
    tgt_logit = jnp.sum(jnp.where(cls_ids == tgt, logits, 0.0),
                        axis=0, keepdims=True)             # (1, TILE_T)
    ce_acc[...] += jnp.sum(lse - tgt_logit)

    # ---- codebook / commitment squared error: once per batch slab ----------
    @pl.when(t == 0)
    def _mse():
        z = z_ref[...].astype(jnp.float32)                 # (1, 1, D*Tl)
        zq = zq_ref[...].astype(jnp.float32)
        d = zq - z
        se_acc[...] += jnp.sum(d * d)

    # ---- finalize on the last grid step -------------------------------------
    @pl.when((b == last_b) & (t == last_t))
    def _finalize():
        ce = ce_acc[...] / jnp.float32(n_total)
        mse = se_acc[...] / jnp.float32(z_total)
        out_ref[...] = (ce + (1.0 + commitment_cost) * mse).astype(jnp.float32)


def _pick_tile_t(t):
    """Largest multiple of 128 (<=1024) dividing T; else the full T."""
    for cand in (1024, 896, 768, 640, 512, 384, 256, 128):
        if t % cand == 0:
            return cand
    return t


def vq_loss(x, recon_x, z, z_q, *, commitment_cost=0.25):
    """x: (B, 1, T) labels stored as float; recon_x: (B, C, T) logits;
    z, z_q: (B, D, Tl) latents."""
    B, C, T = recon_x.shape
    tile_t = _pick_tile_t(T)
    assert T % tile_t == 0
    grid = (B, T // tile_t)

    # Cheap glue only: no transposes, all reshapes are free on contiguous data.
    tgt = x.astype(jnp.int32)                 # (B, 1, T), keep the size-1 dim
    z3 = z.reshape(B, 1, -1)                  # lane-dense (B, 1, D*Tl)
    zq3 = z_q.reshape(B, 1, -1)
    dtl = z3.shape[-1]

    kernel = functools.partial(
        _vq_loss_kernel,
        commitment_cost=float(commitment_cost),
        n_total=B * T,
        z_total=int(z.size),
    )

    out = pl.pallas_call(
        kernel,
        out_shape=jax.ShapeDtypeStruct((1, 1), jnp.float32),
        grid_spec=pltpu.PrefetchScalarGridSpec(
            num_scalar_prefetch=0,
            grid=grid,
            in_specs=[
                # logits tile: full class dim on sublanes, lane-dense time tile
                pl.BlockSpec((1, C, tile_t), lambda b, t: (b, 0, t)),
                # target tile: lane-dense int32 labels
                pl.BlockSpec((1, 1, tile_t), lambda b, t: (b, 0, t)),
                # per-batch latent slabs, resident across the inner t loop
                pl.BlockSpec((1, 1, dtl), lambda b, t: (b, 0, 0)),
                pl.BlockSpec((1, 1, dtl), lambda b, t: (b, 0, 0)),
            ],
            out_specs=pl.BlockSpec((1, 1), lambda b, t: (0, 0)),
            scratch_shapes=[
                pltpu.VMEM((1, 1), jnp.float32),   # CE sum accumulator
                pltpu.VMEM((1, 1), jnp.float32),   # squared-error accumulator
            ],
        ),
        compiler_params=pltpu.CompilerParams(
            # Single scalar accumulator carried across both axes -> sequential.
            dimension_semantics=("arbitrary", "arbitrary"),
            vmem_limit_bytes=32 * 1024 * 1024,
        ),
    )(recon_x, tgt, z3, zq3)
    return out[0, 0]


if __name__ == "__main__":
    key = jax.random.PRNGKey(0)
    k1, k2, k3, k4 = jax.random.split(key, 4)

    B, C, T = 2, 8, 2048      # batch, num classes, sequence length (2 time tiles)
    D, TL = 32, 8             # latent dim, latent length

    # x holds integer class labels stored as float (module does x.long()).
    x = jax.random.randint(k1, (B, 1, T), 0, C).astype(jnp.float32)
    recon_x = jax.random.normal(k2, (B, C, T), dtype=jnp.float32)
    z = jax.random.normal(k3, (B, D, TL), dtype=jnp.float32)
    z_q = jax.random.normal(k4, (B, D, TL), dtype=jnp.float32)

    loss = vq_loss(x, recon_x, z, z_q, commitment_cost=0.25)
    jax.block_until_ready(loss)

    # Plain-JAX reference of the same math.
    logits = jnp.transpose(recon_x, (0, 2, 1)).reshape(B * T, C)
    tgt = x[:, 0, :].astype(jnp.int32).reshape(B * T)
    lse = jax.scipy.special.logsumexp(logits, axis=-1)
    ce = jnp.mean(lse - logits[jnp.arange(B * T), tgt])
    mse = jnp.mean((z_q - z) ** 2)
    ref = ce + mse + 0.25 * mse
    assert jnp.allclose(loss, ref, rtol=1e-5, atol=1e-5), (loss, ref)

    print("KERNEL_OK")
</pallas_src>

<mosaic_0001>
module attributes {stable_mosaic.version = 11 : i64} {
  func.func @_vq_loss_kernel(%arg0: i32, %arg1: i32, %arg2: memref<1x8x1024xf32, #tpu.memory_space<vmem>>, %arg3: memref<1x1x1024xi32, #tpu.memory_space<vmem>>, %arg4: memref<1x1x256xf32, #tpu.memory_space<vmem>>, %arg5: memref<1x1x256xf32, #tpu.memory_space<vmem>>, %arg6: memref<1x1xf32, #tpu.memory_space<vmem>>, %arg7: memref<1x1xf32, #tpu.memory_space<vmem>>, %arg8: memref<1x1xf32, #tpu.memory_space<vmem>>) attributes {dimension_semantics = [#tpu.dimension_semantics<arbitrary>, #tpu.dimension_semantics<arbitrary>], iteration_bounds = array<i64: 2, 2>, scalar_prefetch = 0 : i64, scratch_operands = 2 : i64, tpu.core_type = #tpu.core_type<tc>, window_params = [{transform_indices = @transform_0, window_bounds = array<i64: 1, 8, 1024>}, {transform_indices = @transform_1, window_bounds = array<i64: 1, 1, 1024>}, {transform_indices = @transform_2, window_bounds = array<i64: 1, 1, 256>}, {transform_indices = @transform_3, window_bounds = array<i64: 1, 1, 256>}, {pipeline_mode = #tpu.pipeline_mode<synchronous>, transform_indices = @transform_4, window_bounds = array<i64: 1, 1>}]} {
    %c0_i32 = arith.constant 0 : i32
    %0 = arith.cmpi eq, %arg0, %c0_i32 : i32
    %c0_i32_0 = arith.constant 0 : i32
    %1 = arith.cmpi eq, %arg1, %c0_i32_0 : i32
    %2 = arith.andi %0, %1 : i1
    %3 = arith.extui %2 : i1 to i32
    %c0_i32_1 = arith.constant 0 : i32
    %4 = arith.cmpi ne, %3, %c0_i32_1 : i32
    scf.if %4 {
      %cst_19 = arith.constant 0.000000e+00 : f32
      %42 = vector.broadcast %cst_19 : f32 to vector<1x1xf32>
      %c0_20 = arith.constant 0 : index
      %c0_21 = arith.constant 0 : index
      %43 = vector.load %arg7[%c0_20, %c0_21] : memref<1x1xf32, #tpu.memory_space<vmem>>, vector<1x1xf32>
      tpu.vector_store %arg7[%c0_20, %c0_21], %42 {strides = array<i32>} : memref<1x1xf32, #tpu.memory_space<vmem>>, vector<1x1xf32>,
      %cst_22 = arith.constant 0.000000e+00 : f32
      %44 = vector.broadcast %cst_22 : f32 to vector<1x1xf32>
      %c0_23 = arith.constant 0 : index
      %c0_24 = arith.constant 0 : index
      %45 = vector.load %arg8[%c0_23, %c0_24] : memref<1x1xf32, #tpu.memory_space<vmem>>, vector<1x1xf32>
      tpu.vector_store %arg8[%c0_23, %c0_24], %44 {strides = array<i32>} : memref<1x1xf32, #tpu.memory_space<vmem>>, vector<1x1xf32>,
    } else {
    }
    %c0 = arith.constant 0 : index
    %c0_2 = arith.constant 0 : index
    %c0_3 = arith.constant 0 : index
    %5 = vector.load %arg2[%c0, %c0_2, %c0_3] : memref<1x8x1024xf32, #tpu.memory_space<vmem>>, vector<1x8x1024xf32>
    %6 = vector.shape_cast %5 : vector<1x8x1024xf32> to vector<8x1024xf32>
    %c0_4 = arith.constant 0 : index
    %c0_5 = arith.constant 0 : index
    %c0_6 = arith.constant 0 : index
    %7 = vector.load %arg3[%c0_4, %c0_5, %c0_6] : memref<1x1x1024xi32, #tpu.memory_space<vmem>>, vector<1x1x1024xi32>
    %8 = vector.shape_cast %7 : vector<1x1x1024xi32> to vector<1x1024xi32>
    %cst = arith.constant dense<0xFF800000> : vector<1024xf32>
    %9 = vector.multi_reduction <maximumf>, %6, %cst [0] : vector<8x1024xf32> to vector<1024xf32>
    %10 = vector.shape_cast %9 : vector<1024xf32> to vector<1x1024xf32>
    %11 = vector.broadcast %10 : vector<1x1024xf32> to vector<8x1024xf32>
    %12 = arith.subf %6, %11 : vector<8x1024xf32>
    %13 = math.exp %12 : vector<8x1024xf32>
    %cst_7 = arith.constant dense<0.000000e+00> : vector<1024xf32>
    %14 = vector.multi_reduction <add>, %13, %cst_7 [0] : vector<8x1024xf32> to vector<1024xf32>
    %15 = vector.shape_cast %14 : vector<1024xf32> to vector<1x1024xf32>
    %16 = math.log %15 : vector<1x1024xf32>
    %17 = arith.addf %10, %16 : vector<1x1024xf32>
    %18 = tpu.iota {dimensions = array<i32: 0>} : vector<8x1024xi32>
    %19 = vector.broadcast %8 : vector<1x1024xi32> to vector<8x1024xi32>
    %20 = arith.cmpi eq, %18, %19 : vector<8x1024xi32>
    %cst_8 = arith.constant 0.000000e+00 : f32
    %21 = vector.broadcast %cst_8 : f32 to vector<8x1024xf32>
    %22 = arith.select %20, %6, %21 : vector<8x1024xi1>, vector<8x1024xf32>
    %cst_9 = arith.constant dense<0.000000e+00> : vector<1024xf32>
    %23 = vector.multi_reduction <add>, %22, %cst_9 [0] : vector<8x1024xf32> to vector<1024xf32>
    %24 = vector.shape_cast %23 : vector<1024xf32> to vector<1x1024xf32>
    %c0_10 = arith.constant 0 : index
    %c0_11 = arith.constant 0 : index
    %25 = vector.load %arg7[%c0_10, %c0_11] : memref<1x1xf32, #tpu.memory_space<vmem>>, vector<1x1xf32>
    %26 = arith.subf %17, %24 : vector<1x1024xf32>
    %27 = vector.shape_cast %26 : vector<1x1024xf32> to vector<1x1x1024xf32>
    %cst_12 = arith.constant dense<0.000000e+00> : vector<1xf32>
    %28 = vector.multi_reduction <add>, %27, %cst_12 [1, 2] : vector<1x1x1024xf32> to vector<1xf32>
    %29 = vector.shape_cast %28 : vector<1xf32> to vector<1x1x1xf32>
    %30 = vector.extract %29[0, 0, 0] : f32 from vector<1x1x1xf32>
    %31 = vector.broadcast %30 : f32 to vector<1x1xf32>
    %32 = arith.addf %25, %31 : vector<1x1xf32>
    %c0_13 = arith.constant 0 : index
    %c0_14 = arith.constant 0 : index
    %33 = vector.load %arg7[%c0_13, %c0_14] : memref<1x1xf32, #tpu.memory_space<vmem>>, vector<1x1xf32>
    tpu.vector_store %arg7[%c0_13, %c0_14], %32 {strides = array<i32>} : memref<1x1xf32, #tpu.memory_space<vmem>>, vector<1x1xf32>,
    %c0_i32_15 = arith.constant 0 : i32
    %34 = arith.cmpi eq, %arg1, %c0_i32_15 : i32
    %35 = arith.extui %34 : i1 to i32
    %c0_i32_16 = arith.constant 0 : i32
    %36 = arith.cmpi ne, %35, %c0_i32_16 : i32
    scf.if %36 {
      %c0_19 = arith.constant 0 : index
      %c0_20 = arith.constant 0 : index
      %c0_21 = arith.constant 0 : index
      %42 = vector.load %arg4[%c0_19, %c0_20, %c0_21] : memref<1x1x256xf32, #tpu.memory_space<vmem>>, vector<1x1x256xf32>
      %c0_22 = arith.constant 0 : index
      %c0_23 = arith.constant 0 : index
      %c0_24 = arith.constant 0 : index
      %43 = vector.load %arg5[%c0_22, %c0_23, %c0_24] : memref<1x1x256xf32, #tpu.memory_space<vmem>>, vector<1x1x256xf32>
      %44 = arith.subf %43, %42 : vector<1x1x256xf32>
      %c0_25 = arith.constant 0 : index
      %c0_26 = arith.constant 0 : index
      %45 = vector.load %arg8[%c0_25, %c0_26] : memref<1x1xf32, #tpu.memory_space<vmem>>, vector<1x1xf32>
      %46 = arith.mulf %44, %44 : vector<1x1x256xf32>
      %47 = vector.shape_cast %46 : vector<1x1x256xf32> to vector<1x1x1x256xf32>
      %cst_27 = arith.constant dense<0.000000e+00> : vector<1xf32>
      %48 = vector.multi_reduction <add>, %47, %cst_27 [1, 2, 3] : vector<1x1x1x256xf32> to vector<1xf32>
      %49 = vector.shape_cast %48 : vector<1xf32> to vector<1x1x1x1xf32>
      %50 = vector.extract %49[0, 0, 0, 0] : f32 from vector<1x1x1x1xf32>
      %51 = vector.broadcast %50 : f32 to vector<1x1xf32>
      %52 = arith.addf %45, %51 : vector<1x1xf32>
      %c0_28 = arith.constant 0 : index
      %c0_29 = arith.constant 0 : index
      %53 = vector.load %arg8[%c0_28, %c0_29] : memref<1x1xf32, #tpu.memory_space<vmem>>, vector<1x1xf32>
      tpu.vector_store %arg8[%c0_28, %c0_29], %52 {strides = array<i32>} : memref<1x1xf32, #tpu.memory_space<vmem>>, vector<1x1xf32>,
    } else {
    }
    %c1_i32 = arith.constant 1 : i32
    %37 = arith.cmpi eq, %arg0, %c1_i32 : i32
    %c1_i32_17 = arith.constant 1 : i32
    %38 = arith.cmpi eq, %arg1, %c1_i32_17 : i32
    %39 = arith.andi %37, %38 : i1
    %40 = arith.extui %39 : i1 to i32
    %c0_i32_18 = arith.constant 0 : i32
    %41 = arith.cmpi ne, %40, %c0_i32_18 : i32
    scf.if %41 {
      %c0_19 = arith.constant 0 : index
      %c0_20 = arith.constant 0 : index
      %42 = vector.load %arg7[%c0_19, %c0_20] : memref<1x1xf32, #tpu.memory_space<vmem>>, vector<1x1xf32>
      %cst_21 = arith.constant 4.096000e+03 : f32
      %43 = vector.broadcast %cst_21 : f32 to vector<1x1xf32>
      %44 = arith.divf %42, %43 : vector<1x1xf32>
      %c0_22 = arith.constant 0 : index
      %c0_23 = arith.constant 0 : index
      %45 = vector.load %arg8[%c0_22, %c0_23] : memref<1x1xf32, #tpu.memory_space<vmem>>, vector<1x1xf32>
      %cst_24 = arith.constant 5.120000e+02 : f32
      %46 = vector.broadcast %cst_24 : f32 to vector<1x1xf32>
      %47 = arith.divf %45, %46 : vector<1x1xf32>
      %cst_25 = arith.constant 1.250000e+00 : f32
      %48 = vector.broadcast %cst_25 : f32 to vector<1x1xf32>
      %49 = arith.mulf %48, %47 : vector<1x1xf32>
      %50 = arith.addf %44, %49 : vector<1x1xf32>
      %c0_26 = arith.constant 0 : index
      %c0_27 = arith.constant 0 : index
      %51 = vector.load %arg6[%c0_26, %c0_27] : memref<1x1xf32, #tpu.memory_space<vmem>>, vector<1x1xf32>
      tpu.vector_store %arg6[%c0_26, %c0_27], %50 {strides = array<i32>} : memref<1x1xf32, #tpu.memory_space<vmem>>, vector<1x1xf32>,
    } else {
    }
    return
  }
  func.func @transform_0(%arg0: i32, %arg1: i32) -> (i32, i32, i32) {
    %c0_i32 = arith.constant 0 : i32
    %c0_i32_0 = arith.constant 0 : i32
    return %arg0, %c0_i32, %arg1 : i32, i32, i32
  }
  func.func @transform_1(%arg0: i32, %arg1: i32) -> (i32, i32, i32) {
    %c0_i32 = arith.constant 0 : i32
    %c0_i32_0 = arith.constant 0 : i32
    return %arg0, %c0_i32, %arg1 : i32, i32, i32
  }
  func.func @transform_2(%arg0: i32, %arg1: i32) -> (i32, i32, i32) {
    %c0_i32 = arith.constant 0 : i32
    %c0_i32_0 = arith.constant 0 : i32
    %c0_i32_1 = arith.constant 0 : i32
    return %arg0, %c0_i32, %c0_i32_0 : i32, i32, i32
  }
  func.func @transform_3(%arg0: i32, %arg1: i32) -> (i32, i32, i32) {
    %c0_i32 = arith.constant 0 : i32
    %c0_i32_0 = arith.constant 0 : i32
    %c0_i32_1 = arith.constant 0 : i32
    return %arg0, %c0_i32, %c0_i32_0 : i32, i32, i32
  }
  func.func @transform_4(%arg0: i32, %arg1: i32) -> (i32, i32) {
    %c0_i32 = arith.constant 0 : i32
    %c0_i32_0 = arith.constant 0 : i32
    %c0_i32_1 = arith.constant 0 : i32
    return %c0_i32, %c0_i32_0 : i32, i32
  }
}

</mosaic_0001>

<llo_original>
// kernel: tpu_custom_call.1
$region0: #{tpu_custom_call.1}
  #allocation0 [shape = 'u32[]', space=smem, size = 0x4, offset = 0x4, fixed_abs, tag = 'smem constant byte address 0x4 - core index']
  #allocation1 [shape = 'u32[144,128]{1,0:T(1,128)}', space=vmem, size = 0x12000, scoped, tag = 'internal scratch']
  #allocation2 [shape = 'f32[1,1]{1,0:T(1,128)}', space=vmem, size = 0x200, scoped, tag = 'scratch operand']
  #allocation3 [shape = 'f32[1,1]{1,0:T(1,128)}', space=vmem, size = 0x200, scoped, tag = 'scratch operand']
  %s0 = inlined_call_operand.hbm [shape: f32[2,8,2048], index: 0, kind: input, shape index: {}]
  %s1 = inlined_call_operand.hbm [shape: s32[2,1,2048], index: 1, kind: input, shape index: {}]
  %s2 = inlined_call_operand.hbm [shape: f32[2,1,256], index: 2, kind: input, shape index: {}]
  %s3 = inlined_call_operand.vmem [shape: f32[2,1,256], index: 3, kind: input, shape index: {}]
  %s4 = inlined_call_operand.hbm [shape: f32[1,1], index: 4, kind: output, shape index: {}]
  %s5 = sld [smem:[#allocation0]]
  $region73: #{tpu_custom_call.1} parent=0
    _
  %s7 = ssub.s32 1, %s5
  %s8 = scalar_select 0, %s7, %s5
  $region1: #{tpu_custom_call.1} parent=0
    #allocation4 [shape = 'u8[65536]{0}', space=vmem, size = 0x10000, scoped, tag = 'input window, operand 0']
    #allocation5 [shape = 's32[2]{0}', space=sflag, size = 0x8, scoped, tag = 'scoped memory for tpu_custom_call.1']
    #allocation6 [shape = 's32[2]{0}', space=sflag, size = 0x8, scoped, tag = 'scoped memory for tpu_custom_call.1']
    #allocation7 [shape = 'u8[8192]{0}', space=vmem, size = 0x2000, scoped, tag = 'input window, operand 1']
    #allocation8 [shape = 's32[2]{0}', space=sflag, size = 0x8, scoped, tag = 'scoped memory for tpu_custom_call.1']
    #allocation9 [shape = 'u8[2048]{0}', space=vmem, size = 0x800, scoped, tag = 'input window, operand 2']
    #allocation10 [shape = 'u8[512]{0}', space=vmem, size = 0x400, scoped, tag = 'output window, operand 0, single buffered']
    %9 = vsyncpa [#allocation5], 0
    %s10 = scalar_lea.sflag [#allocation5], 1
    %11 = vsyncpa %s10, 0
    %12 = vsyncpa [#allocation8], 0
    %s13 = scalar_lea.sflag [#allocation8], 1
    %14 = vsyncpa %s13, 0
    %15 = vsyncpa [#allocation6], 0
    loop: start=0, step=1, limit=6
    $region2: #{tpu_custom_call.1} parent=1 // loop_pre_header
      _
    $region3: #{tpu_custom_call.1} parent=1 // loop_header
      %s17 = sphi 0, %s21
      %p18 = scmp.ge.s32.totalorder %s17, 6
      %s24 = sphi 0, %s36
      %s25 = sphi 0, %s32
      %s26 = sphi 0, %s24
      %s27 = sphi 0, %s25
      %s28 = sphi 0, %s26
      %s29 = sphi 0, %s27
      %s41 = sphi 0, %s43
      %s44 = sphi 0, %s41
      %s45 = sphi 0, %s44
      %s61 = sphi 0, %s45
      %s69 = sphi 0, %s71
      %s72 = sphi 0, %s69
      %s73 = sphi 0, %s72
      %s89 = sphi 0, %s73
      %s95 = sphi 0, %s97
      %s98 = sphi 0, %s95
      %s99 = sphi 0, %s98
      %s115 = sphi 0, %s99
      %s121 = sphi 0, %s123
      %s124 = sphi 0, %s121
      %s125 = sphi 0, %s124
      %s141 = sphi 0, %s125
      %s145 = sphi 0, %s145
      %s147 = sphi 0, %s145
      %s148 = sphi 0, %s147
      %s162 = sphi 0, %s148
    $region4: #{tpu_custom_call.1} parent=1 // loop_header_branch
      %20 = sbr.rel (%p18) target = $region8
    $region5: #{tpu_custom_call.1} parent=1 // loop_body
      %s22 = ssub.s32 %s17, 1
      %s23 = ssub.s32 %s17, 2
      %s30 = sadd.s32 1, %s25
      %p31 = scmp.ge.s32.totalorder %s30, 2
      %s32 = scalar_select %p31, 0, %s30
      %s33 = sadd.s32 1, %s24
      %s34 = scalar_select %p31, %s33, %s24
      %p35 = scmp.ge.s32.totalorder %s34, 2
      %s36 = scalar_select %p35, 0, %s34
      %s37 = ssub.s32 %s24, %s36
      %s38 = ssub.s32 %s25, %s32
      %s39 = sor.u32 %s37, %s38
      %p40 = scmp.eq.s32.totalorder %s39, 0
      %s42 = sadd.s32 %s41, 1
      %s43 = scalar_select %p40, %s41, %s42
      %p46 = pneg %p40
      %p47 = scmp.eq.s32.totalorder %s17, 3
      %p48 = por %p46, %p47
      %p49 = scmp.ne.s32.totalorder %s41, %s44
      %p50 = scmp.eq.s32.totalorder %s17, 0
      %p51 = por %p49, %p50
      %p52 = scmp.ne.s32.totalorder %s41, %s44
      %p53 = scmp.eq.s32.totalorder %s22, 3
      %p54 = por %p52, %p53
      %p55 = scmp.ne.s32.totalorder %s44, %s45
      %p56 = scmp.eq.s32.totalorder %s22, 0
      %p57 = por %p55, %p56
      %p58 = scmp.ne.s32.totalorder %s44, %s45
      %p59 = scmp.eq.s32.totalorder %s23, 3
      %p60 = por %p58, %p59
      %p62 = scmp.ne.s32.totalorder %s45, %s61
      %p63 = scmp.eq.s32.totalorder %s23, 0
      %p64 = por %p62, %p63
      %s65 = ssub.s32 %s24, %s36
      %s66 = ssub.s32 %s25, %s32
      %s67 = sor.u32 %s65, %s66
      %p68 = scmp.eq.s32.totalorder %s67, 0
      %s70 = sadd.s32 %s69, 1
      %s71 = scalar_select %p68, %s69, %s70
      %p74 = pneg %p68
      %p75 = scmp.eq.s32.totalorder %s17, 3
      %p76 = por %p74, %p75
      %p77 = scmp.ne.s32.totalorder %s69, %s72
      %p78 = scmp.eq.s32.totalorder %s17, 0
      %p79 = por %p77, %p78
      %p80 = scmp.ne.s32.totalorder %s69, %s72
      %p81 = scmp.eq.s32.totalorder %s22, 3
      %p82 = por %p80, %p81
      %p83 = scmp.ne.s32.totalorder %s72, %s73
      %p84 = scmp.eq.s32.totalorder %s22, 0
      %p85 = por %p83, %p84
      %p86 = scmp.ne.s32.totalorder %s72, %s73
      %p87 = scmp.eq.s32.totalorder %s23, 3
      %p88 = por %p86, %p87
      %p90 = scmp.ne.s32.totalorder %s73, %s89
      %p91 = scmp.eq.s32.totalorder %s23, 0
      %p92 = por %p90, %p91
      %s93 = ssub.s32 %s24, %s36
      %p94 = scmp.eq.s32.totalorder %s93, 0
      %s96 = sadd.s32 %s95, 1
      %s97 = scalar_select %p94, %s95, %s96
      %p100 = pneg %p94
      %p101 = scmp.eq.s32.totalorder %s17, 3
      %p102 = por %p100, %p101
      %p103 = scmp.ne.s32.totalorder %s95, %s98
      %p104 = scmp.eq.s32.totalorder %s17, 0
      %p105 = por %p103, %p104
      %p106 = scmp.ne.s32.totalorder %s95, %s98
      %p107 = scmp.eq.s32.totalorder %s22, 3
      %p108 = por %p106, %p107
      %p109 = scmp.ne.s32.totalorder %s98, %s99
      %p110 = scmp.eq.s32.totalorder %s22, 0
      %p111 = por %p109, %p110
      %p112 = scmp.ne.s32.totalorder %s98, %s99
      %p113 = scmp.eq.s32.totalorder %s23, 3
      %p114 = por %p112, %p113
      %p116 = scmp.ne.s32.totalorder %s99, %s115
      %p117 = scmp.eq.s32.totalorder %s23, 0
      %p118 = por %p116, %p117
      %s119 = ssub.s32 %s24, %s36
      %p120 = scmp.eq.s32.totalorder %s119, 0
      %s122 = sadd.s32 %s121, 1
      %s123 = scalar_select %p120, %s121, %s122
      %p126 = pneg %p120
      %p127 = scmp.eq.s32.totalorder %s17, 3
      %p128 = por %p126, %p127
      %p129 = scmp.ne.s32.totalorder %s121, %s124
      %p130 = scmp.eq.s32.totalorder %s17, 0
      %p131 = por %p129, %p130
      %p132 = scmp.ne.s32.totalorder %s121, %s124
      %p133 = scmp.eq.s32.totalorder %s22, 3
      %p134 = por %p132, %p133
      %p135 = scmp.ne.s32.totalorder %s124, %s125
      %p136 = scmp.eq.s32.totalorder %s22, 0
      %p137 = por %p135, %p136
      %p138 = scmp.ne.s32.totalorder %s124, %s125
      %p139 = scmp.eq.s32.totalorder %s23, 3
      %p140 = por %p138, %p139
      %p142 = scmp.ne.s32.totalorder %s125, %s141
      %p143 = scmp.eq.s32.totalorder %s23, 0
      %p144 = por %p142, %p143
      %s146 = sadd.s32 %s145, 1
      %p149 = scmp.eq.s32.totalorder %s17, 3
      %p150 = scmp.ne.s32.totalorder %s145, %s147
      %p151 = scmp.eq.s32.totalorder %s17, 0
      %p152 = por %p150, %p151
      %p153 = scmp.ne.s32.totalorder %s145, %s147
      %p154 = scmp.eq.s32.totalorder %s22, 3
      %p155 = por %p153, %p154
      %p156 = scmp.ne.s32.totalorder %s147, %s148
      %p157 = scmp.eq.s32.totalorder %s22, 0
      %p158 = por %p156, %p157
      %p159 = scmp.ne.s32.totalorder %s147, %s148
      %p160 = scmp.eq.s32.totalorder %s23, 3
      %p161 = por %p159, %p160
      %p163 = scmp.ne.s32.totalorder %s148, %s162
      %p164 = scmp.eq.s32.totalorder %s23, 0
      %p165 = por %p163, %p164
      %p166 = scmp.le.s32.totalorder 1, %s17
      %p167 = scmp.lt.s32.totalorder %s17, 5
      %p168 = pnand %p166, %p167
      %p169 = pneg %p168
      // Predicated region
      $region9: #{tpu_custom_call.1} parent=5 // pred_check
        _
      $region10: #{tpu_custom_call.1} parent=5 // pred_check_branch
        %171 = sbr.rel (%p168) target = $region12
      $region11: #{tpu_custom_call.1} parent=5 // pred_region
        %s172 = ssub.s32 %s17, 1
      $region12: #{tpu_custom_call.1} parent=5 // pred_fallthru
        _
      %p173 = scmp.lt.s32.totalorder %s17, 4
      // Predicated region
      $region13: #{tpu_custom_call.1} parent=5 // pred_check
        %p174 = pneg %p173
      $region14: #{tpu_custom_call.1} parent=5 // pred_check_branch
        %176 = sbr.rel (%p174) target = $region16
      $region15: #{tpu_custom_call.1} parent=5 // pred_region
        // Predicated region
        $region17: #{tpu_custom_call.1} parent=15 // pred_check
          %p177 = pneg %p51
        $region18: #{tpu_custom_call.1} parent=15 // pred_check_branch
          %179 = sbr.rel (%p177) target = $region20
        $region19: #{tpu_custom_call.1} parent=15 // pred_region
          %s180 = sand.u32 %s41, 1
          %s181 = scalar_lea.sflag [#allocation5], %s180
          %s182 = sand.u32 %s41, 1
          %s183 = smul.addr %s182, 64
          %s184 = scalar_lea.vmem [#allocation4], %s183
          %s185 = smul.u32 8, %s25
          %s187 = ssub.s32 1024, 1024
          %188 = vsyncadd %s181, %s187
          %s189 = smul.addr %s24, 16
          %s190 = sadd.s32 %s185, %s189
          %s191 = smul.addr %s190, 128
          %s192 = scalar_lea.hbm %s0, %s191
          %s194 = sshll.u32 %s184, 4
          %s195 = int_to_ptr.vmem [resolvable:$true] %s194
          %197 = dma.hbm_to_vmem [thread:$0]  %s192, 1024, %s195, %s181
        $region20: #{tpu_custom_call.1} parent=15 // pred_fallthru
          _
        // Predicated region
        $region21: #{tpu_custom_call.1} parent=15 // pred_check
          %p198 = pneg %p79
        $region22: #{tpu_custom_call.1} parent=15 // pred_check_branch
          %200 = sbr.rel (%p198) target = $region24
        $region23: #{tpu_custom_call.1} parent=15 // pred_region
          %s201 = sand.u32 %s17, 1
          %s202 = scalar_lea.sflag [#allocation8], %s201
          %s203 = sand.u32 %s69, 1
          %s204 = smul.addr %s203, 8
          %s205 = scalar_lea.vmem [#allocation7], %s204
          %s206 = smul.u32 8, %s25
          %s208 = ssub.s32 128, 128
          %209 = vsyncadd %s202, %s208
          %s210 = smul.addr %s24, 16
          %s211 = sadd.s32 %s206, %s210
          %s212 = smul.addr %s211, 16
          %s213 = scalar_lea.hbm %s1, %s212
          %s215 = sshll.u32 %s205, 4
          %s216 = int_to_ptr.vmem [resolvable:$true] %s215
          %218 = dma.hbm_to_vmem [thread:$0]  %s213, 128, %s216, %s202
        $region24: #{tpu_custom_call.1} parent=15 // pred_fallthru
          _
        // Predicated region
        $region25: #{tpu_custom_call.1} parent=15 // pred_check
          %p219 = pneg %p105
        $region26: #{tpu_custom_call.1} parent=15 // pred_check_branch
          %221 = sbr.rel (%p219) target = $region28
        $region27: #{tpu_custom_call.1} parent=15 // pred_region
          %s222 = sand.u32 %s17, 1
          %s223 = scalar_lea.sflag [#allocation8], %s222
          %s224 = sand.u32 %s95, 1
          %s225 = smul.addr %s224, 2
          %s226 = scalar_lea.vmem [#allocation9], %s225
          %s228 = ssub.s32 32, 32
          %229 = vsyncadd %s223, %s228
          %s230 = smul.addr %s24, 2
          %s231 = smul.addr %s230, 16
          %s232 = scalar_lea.hbm %s2, %s231
          %s234 = sshll.u32 %s226, 4
          %s235 = int_to_ptr.vmem [resolvable:$true] %s234
          %237 = dma.hbm_to_vmem [thread:$0]  %s232, 32, %s235, %s223
        $region28: #{tpu_custom_call.1} parent=15 // pred_fallthru
          _
        // Predicated region
        $region29: #{tpu_custom_call.1} parent=15 // pred_check
          %p238 = pneg %p131
        $region30: #{tpu_custom_call.1} parent=15 // pred_check_branch
          %240 = sbr.rel (%p238) target = $region32
        $region31: #{tpu_custom_call.1} parent=15 // pred_region
          %p241 = scmp.lt.s32.totalorder %s24, 1
          %s242 = scalar_select %p241, %s24, 1
          %s243 = smul.addr %s242, 2
          %s244 = scalar_lea.vmem %s3, %s243
        $region32: #{tpu_custom_call.1} parent=15 // pred_fallthru
          _
      $region16: #{tpu_custom_call.1} parent=5 // pred_fallthru
        _
      %p245 = scmp.le.s32.totalorder 1, %s17
      %p246 = scmp.lt.s32.totalorder %s17, 5
      %p247 = pnand %p245, %p246
      %p248 = pneg %p247
      // Predicated region
      $region33: #{tpu_custom_call.1} parent=5 // pred_check
        _
      $region34: #{tpu_custom_call.1} parent=5 // pred_check_branch
        %250 = sbr.rel (%p247) target = $region36
      $region35: #{tpu_custom_call.1} parent=5 // pred_region
        %s251 = ssub.s32 %s17, 1
        %s252 = sand.u32 %s44, 1
        %s253 = scalar_lea.sflag [#allocation5], %s252
        %s254 = sand.u32 %s44, 1
        %s255 = smul.addr %s254, 64
        %s256 = scalar_lea.vmem [#allocation4], %s255
        // Predicated region
        $region37: #{tpu_custom_call.1} parent=35 // pred_check
          %p257 = pneg %p57
        $region38: #{tpu_custom_call.1} parent=35 // pred_check_branch
          %259 = sbr.rel (%p257) target = $region40
        $region39: #{tpu_custom_call.1} parent=35 // pred_region
          %260 = dma.done %s253, 1024
        $region40: #{tpu_custom_call.1} parent=35 // pred_fallthru
          _
        %s261 = sand.u32 %s22, 1
        %s262 = scalar_lea.sflag [#allocation8], %s261
        %s263 = sand.u32 %s72, 1
        %s264 = smul.addr %s263, 8
        %s265 = scalar_lea.vmem [#allocation7], %s264
        // Predicated region
        $region41: #{tpu_custom_call.1} parent=35 // pred_check
          %p266 = pneg %p85
        $region42: #{tpu_custom_call.1} parent=35 // pred_check_branch
          %268 = sbr.rel (%p266) target = $region44
        $region43: #{tpu_custom_call.1} parent=35 // pred_region
          %269 = dma.done %s262, 128
        $region44: #{tpu_custom_call.1} parent=35 // pred_fallthru
          _
        %s270 = sand.u32 %s22, 1
        %s271 = scalar_lea.sflag [#allocation8], %s270
        %s272 = sand.u32 %s98, 1
        %s273 = smul.addr %s272, 2
        %s274 = scalar_lea.vmem [#allocation9], %s273
        // Predicated region
        $region45: #{tpu_custom_call.1} parent=35 // pred_check
          %p275 = pneg %p111
        $region46: #{tpu_custom_call.1} parent=35 // pred_check_branch
          %277 = sbr.rel (%p275) target = $region48
        $region47: #{tpu_custom_call.1} parent=35 // pred_region
          %278 = dma.done %s271, 32
        $region48: #{tpu_custom_call.1} parent=35 // pred_fallthru
          _
        %s279 = sand.u32 %s44, 1
        %s280 = scalar_lea.sflag [#allocation5], %s279
        %s281 = sand.u32 %s44, 1
        %s282 = smul.addr %s281, 64
        %s283 = scalar_lea.vmem [#allocation4], %s282
        %p284 = pneg %p57
        %p285 = pneg %p54
        %s286 = sand.u32 %s22, 1
        %s287 = scalar_lea.sflag [#allocation8], %s286
        %s288 = sand.u32 %s72, 1
        %s289 = smul.addr %s288, 8
        %s290 = scalar_lea.vmem [#allocation7], %s289
        %p291 = pneg %p85
        %p292 = pneg %p82
        %s293 = sand.u32 %s22, 1
        %s294 = scalar_lea.sflag [#allocation8], %s293
        %s295 = sand.u32 %s98, 1
        %s296 = smul.addr %s295, 2
        %s297 = scalar_lea.vmem [#allocation9], %s296
        %p298 = pneg %p111
        %p299 = pneg %p108
        %p300 = scmp.lt.s32.totalorder %s26, 1
        %s301 = scalar_select %p300, %s26, 1
        %s302 = smul.addr %s301, 2
        %s303 = scalar_lea.vmem %s3, %s302
        %p304 = pneg %p137
        %p305 = pneg %p134
        %p306 = pneg %p158
        %p307 = pneg %p155
        %s308 = smul.u32 8, %s27
        %s309 = smul.u32 8, %s27
        %p310 = scmp.lt.s32.totalorder %s26, 1
        %s311 = scalar_select %p310, %s26, 1
        %s312 = smul.addr %s311, 2
        %s313 = scalar_lea.vmem %s3, %s312
        %p314 = scmp.eq.s32.totalorder %s26, 0
        %p315 = scmp.eq.s32.totalorder %s27, 0
        %p316 = pnand %p314, %p315
        %p317 = pneg %p316
        // Predicated region
        $region49: #{tpu_custom_call.1} parent=35 // pred_check
          _
        $region50: #{tpu_custom_call.1} parent=35 // pred_check_branch
          %319 = sbr.rel (%p316) target = $region52
        $region51: #{tpu_custom_call.1} parent=35 // pred_region
          %vm320 = vcmask 0
          %321 = vst.msk [vmem:[#allocation2] sm:$0x1] %vm320, 0.0
          %322 = vst.msk [vmem:[#allocation3] sm:$0x1] %vm320, 0.0
        $region52: #{tpu_custom_call.1} parent=35 // pred_fallthru
          _
        %v323 = vld [vmem:[%s256] sm:$0xff]
        %v324 = vld [vmem:[%s256 + $0x8] sm:$0xff]
        %v325 = vld [vmem:[%s256 + $0x10] sm:$0xff]
        %v326 = vld [vmem:[%s256 + $0x18] sm:$0xff]
        %v327 = vld [vmem:[%s256 + $0x20] sm:$0xff]
        %v328 = vld [vmem:[%s256 + $0x28] sm:$0xff]
        %v329 = vld [vmem:[%s256 + $0x30] sm:$0xff]
        %v330 = vld [vmem:[%s256 + $0x38] sm:$0xff]
        %v331 = vld [vmem:[%s265] sm:$0xff]
        %v332 = vrot.slane %v323, 4
        %v333 = vmax.f32 %v323, %v332
        %v334 = vrot.slane %v333, 2
        %v335 = vmax.f32 %v333, %v334
        %v336 = vrot.slane %v335, 1
        %v337 = vmax.f32 %v335, %v336
        %v338 = vrot.slane %v324, 4
        %v339 = vmax.f32 %v324, %v338
        %v340 = vrot.slane %v339, 2
        %v341 = vmax.f32 %v339, %v340
        %v342 = vrot.slane %v341, 1
        %v343 = vmax.f32 %v341, %v342
        %v344 = vrot.slane %v325, 4
        %v345 = vmax.f32 %v325, %v344
        %v346 = vrot.slane %v345, 2
        %v347 = vmax.f32 %v345, %v346
        %v348 = vrot.slane %v347, 1
        %v349 = vmax.f32 %v347, %v348
        %v350 = vrot.slane %v326, 4
        %v351 = vmax.f32 %v326, %v350
        %v352 = vrot.slane %v351, 2
        %v353 = vmax.f32 %v351, %v352
        %v354 = vrot.slane %v353, 1
        %v355 = vmax.f32 %v353, %v354
        %v356 = vrot.slane %v327, 4
        %v357 = vmax.f32 %v327, %v356
        %v358 = vrot.slane %v357, 2
        %v359 = vmax.f32 %v357, %v358
        %v360 = vrot.slane %v359, 1
        %v361 = vmax.f32 %v359, %v360
        %v362 = vrot.slane %v328, 4
        %v363 = vmax.f32 %v328, %v362
        %v364 = vrot.slane %v363, 2
        %v365 = vmax.f32 %v363, %v364
        %v366 = vrot.slane %v365, 1
        %v367 = vmax.f32 %v365, %v366
        %v368 = vrot.slane %v329, 4
        %v369 = vmax.f32 %v329, %v368
        %v370 = vrot.slane %v369, 2
        %v371 = vmax.f32 %v369, %v370
        %v372 = vrot.slane %v371, 1
        %v373 = vmax.f32 %v371, %v372
        %v374 = vrot.slane %v330, 4
        %v375 = vmax.f32 %v330, %v374
        %v376 = vrot.slane %v375, 2
        %v377 = vmax.f32 %v375, %v376
        %v378 = vrot.slane %v377, 1
        %v379 = vmax.f32 %v377, %v378
        %v380 = vsub.f32 %v323, %v337
        %v381 = vsub.f32 %v324, %v343
        %v382 = vsub.f32 %v325, %v349
        %v383 = vsub.f32 %v326, %v355
        %v384 = vsub.f32 %v327, %v361
        %v385 = vsub.f32 %v328, %v367
        %v386 = vsub.f32 %v329, %v373
        %v387 = vsub.f32 %v330, %v379
        %v388 = vmul.f32 %v380, 1.442695
        %v389 = vpow.pop %v388
        %v390 = vmul.f32 %v381, 1.442695
        %v391 = vpow.pop %v390
        %v392 = vmul.f32 %v382, 1.442695
        %v393 = vpow.pop %v392
        %v394 = vmul.f32 %v383, 1.442695
        %v395 = vpow.pop %v394
        %v396 = vmul.f32 %v384, 1.442695
        %v397 = vpow.pop %v396
        %v398 = vmul.f32 %v385, 1.442695
        %v399 = vpow.pop %v398
        %v400 = vmul.f32 %v386, 1.442695
        %v401 = vpow.pop %v400
        %v402 = vmul.f32 %v387, 1.442695
        %v403 = vpow.pop %v402
        %v404 = vrot.slane %v389, 4
        %v405 = vadd.f32 %v389, %v404
        %v406 = vrot.slane %v405, 2
        %v407 = vadd.f32 %v405, %v406
        %v408 = vrot.slane %v407, 1
        %v409 = vadd.f32 %v407, %v408
        %v410 = vrot.slane %v391, 4
        %v411 = vadd.f32 %v391, %v410
        %v412 = vrot.slane %v411, 2
        %v413 = vadd.f32 %v411, %v412
        %v414 = vrot.slane %v413, 1
        %v415 = vadd.f32 %v413, %v414
        %v416 = vrot.slane %v393, 4
        %v417 = vadd.f32 %v393, %v416
        %v418 = vrot.slane %v417, 2
        %v419 = vadd.f32 %v417, %v418
        %v420 = vrot.slane %v419, 1
        %v421 = vadd.f32 %v419, %v420
        %v422 = vrot.slane %v395, 4
        %v423 = vadd.f32 %v395, %v422
        %v424 = vrot.slane %v423, 2
        %v425 = vadd.f32 %v423, %v424
        %v426 = vrot.slane %v425, 1
        %v427 = vadd.f32 %v425, %v426
        %v428 = vrot.slane %v397, 4
        %v429 = vadd.f32 %v397, %v428
        %v430 = vrot.slane %v429, 2
        %v431 = vadd.f32 %v429, %v430
        %v432 = vrot.slane %v431, 1
        %v433 = vadd.f32 %v431, %v432
        %v434 = vrot.slane %v399, 4
        %v435 = vadd.f32 %v399, %v434
        %v436 = vrot.slane %v435, 2
        %v437 = vadd.f32 %v435, %v436
        %v438 = vrot.slane %v437, 1
        %v439 = vadd.f32 %v437, %v438
        %v440 = vrot.slane %v401, 4
        %v441 = vadd.f32 %v401, %v440
        %v442 = vrot.slane %v441, 2
        %v443 = vadd.f32 %v441, %v442
        %v444 = vrot.slane %v443, 1
        %v445 = vadd.f32 %v443, %v444
        %v446 = vrot.slane %v403, 4
        %v447 = vadd.f32 %v403, %v446
        %v448 = vrot.slane %v447, 2
        %v449 = vadd.f32 %v447, %v448
        %v450 = vrot.slane %v449, 1
        %v451 = vadd.f32 %v449, %v450
        %v452 = vlog2.pop %v409
        %v453 = vmul.f32 %v452, 0.6931472
        %v454 = vlog2.pop %v415
        %v455 = vmul.f32 %v454, 0.6931472
        %v456 = vlog2.pop %v421
        %v457 = vmul.f32 %v456, 0.6931472
        %v458 = vlog2.pop %v427
        %v459 = vmul.f32 %v458, 0.6931472
        %v460 = vlog2.pop %v433
        %v461 = vmul.f32 %v460, 0.6931472
        %v462 = vlog2.pop %v439
        %v463 = vmul.f32 %v462, 0.6931472
        %v464 = vlog2.pop %v445
        %v465 = vmul.f32 %v464, 0.6931472
        %v466 = vlog2.pop %v451
        %v467 = vmul.f32 %v466, 0.6931472
        %v468 = vadd.f32 %v337, %v453
        %v469 = vadd.f32 %v343, %v455
        %v470 = vadd.f32 %v349, %v457
        %v471 = vadd.f32 %v355, %v459
        %v472 = vadd.f32 %v361, %v461
        %v473 = vadd.f32 %v367, %v463
        %v474 = vadd.f32 %v373, %v465
        %v475 = vadd.f32 %v379, %v467
        %v476 = vlaneseq
        %v477 = vshrl.u32 %v476, 7
        %v478 = vlaneseq
        %v479 = vshrl.u32 %v478, 7
        %v480 = vsub.s32 0, %v479
        %v481 = vrot.slane %v331, %v480
        %v482 = vlaneseq
        %v483 = vshrl.u32 %v482, 7
        %v484 = vsub.s32 1, %v483
        %v485 = vrot.slane %v331, %v484
        %v486 = vlaneseq
        %v487 = vshrl.u32 %v486, 7
        %v488 = vsub.s32 2, %v487
        %v489 = vrot.slane %v331, %v488
        %v490 = vlaneseq
        %v491 = vshrl.u32 %v490, 7
        %v492 = vsub.s32 3, %v491
        %v493 = vrot.slane %v331, %v492
        %v494 = vlaneseq
        %v495 = vshrl.u32 %v494, 7
        %v496 = vsub.s32 4, %v495
        %v497 = vrot.slane %v331, %v496
        %v498 = vlaneseq
        %v499 = vshrl.u32 %v498, 7
        %v500 = vsub.s32 5, %v499
        %v501 = vrot.slane %v331, %v500
        %v502 = vlaneseq
        %v503 = vshrl.u32 %v502, 7
        %v504 = vsub.s32 6, %v503
        %v505 = vrot.slane %v331, %v504
        %v506 = vlaneseq
        %v507 = vshrl.u32 %v506, 7
        %v508 = vsub.s32 7, %v507
        %v509 = vrot.slane %v331, %v508
        %vm510 = vcmp.eq.s32.totalorder %v477, %v481
        %vm511 = vcmp.eq.s32.totalorder %v477, %v485
        %vm512 = vcmp.eq.s32.totalorder %v477, %v489
        %vm513 = vcmp.eq.s32.totalorder %v477, %v493
        %vm514 = vcmp.eq.s32.totalorder %v477, %v497
        %vm515 = vcmp.eq.s32.totalorder %v477, %v501
        %vm516 = vcmp.eq.s32.totalorder %v477, %v505
        %vm517 = vcmp.eq.s32.totalorder %v477, %v509
        %v518 = vsel %vm510, %v323, 0.0
        %v519 = vsel %vm511, %v324, 0.0
        %v520 = vsel %vm512, %v325, 0.0
        %v521 = vsel %vm513, %v326, 0.0
        %v522 = vsel %vm514, %v327, 0.0
        %v523 = vsel %vm515, %v328, 0.0
        %v524 = vsel %vm516, %v329, 0.0
        %v525 = vsel %vm517, %v330, 0.0
        %v526 = vrot.slane %v518, 4
        %v527 = vadd.f32 %v518, %v526
        %v528 = vrot.slane %v527, 2
        %v529 = vadd.f32 %v527, %v528
        %v530 = vrot.slane %v529, 1
        %v531 = vadd.f32 %v529, %v530
        %v532 = vrot.slane %v519, 4
        %v533 = vadd.f32 %v519, %v532
        %v534 = vrot.slane %v533, 2
        %v535 = vadd.f32 %v533, %v534
        %v536 = vrot.slane %v535, 1
        %v537 = vadd.f32 %v535, %v536
        %v538 = vrot.slane %v520, 4
        %v539 = vadd.f32 %v520, %v538
        %v540 = vrot.slane %v539, 2
        %v541 = vadd.f32 %v539, %v540
        %v542 = vrot.slane %v541, 1
        %v543 = vadd.f32 %v541, %v542
        %v544 = vrot.slane %v521, 4
        %v545 = vadd.f32 %v521, %v544
        %v546 = vrot.slane %v545, 2
        %v547 = vadd.f32 %v545, %v546
        %v548 = vrot.slane %v547, 1
        %v549 = vadd.f32 %v547, %v548
        %v550 = vrot.slane %v522, 4
        %v551 = vadd.f32 %v522, %v550
        %v552 = vrot.slane %v551, 2
        %v553 = vadd.f32 %v551, %v552
        %v554 = vrot.slane %v553, 1
        %v555 = vadd.f32 %v553, %v554
        %v556 = vrot.slane %v523, 4
        %v557 = vadd.f32 %v523, %v556
        %v558 = vrot.slane %v557, 2
        %v559 = vadd.f32 %v557, %v558
        %v560 = vrot.slane %v559, 1
        %v561 = vadd.f32 %v559, %v560
        %v562 = vrot.slane %v524, 4
        %v563 = vadd.f32 %v524, %v562
        %v564 = vrot.slane %v563, 2
        %v565 = vadd.f32 %v563, %v564
        %v566 = vrot.slane %v565, 1
        %v567 = vadd.f32 %v565, %v566
        %v568 = vrot.slane %v525, 4
        %v569 = vadd.f32 %v525, %v568
        %v570 = vrot.slane %v569, 2
        %v571 = vadd.f32 %v569, %v570
        %v572 = vrot.slane %v571, 1
        %v573 = vadd.f32 %v571, %v572
        %v574 = vld [vmem:[#allocation2] sm:$0x1]
        %v575 = vsub.f32 %v468, %v531
        %v576 = vsub.f32 %v469, %v537
        %v577 = vsub.f32 %v470, %v543
        %v578 = vsub.f32 %v471, %v549
        %v579 = vsub.f32 %v472, %v555
        %v580 = vsub.f32 %v473, %v561
        %v581 = vsub.f32 %v474, %v567
        %v582 = vsub.f32 %v475, %v573
        %vm583 = vcmask 1040384
        %v584 = vsel %vm583, %v575, 0.0
        %v585 = vsel %vm583, %v576, 0.0
        %v586 = vadd.f32 %v584, %v585
        %v587 = vsel %vm583, %v577, 0.0
        %v588 = vadd.f32 %v586, %v587
        %v589 = vsel %vm583, %v578, 0.0
        %v590 = vadd.f32 %v588, %v589
        %v591 = vsel %vm583, %v579, 0.0
        %v592 = vadd.f32 %v590, %v591
        %v593 = vsel %vm583, %v580, 0.0
        %v594 = vadd.f32 %v592, %v593
        %v595 = vsel %vm583, %v581, 0.0
        %v596 = vadd.f32 %v594, %v595
        %v597 = vsel %vm583, %v582, 0.0
        %v598 = vadd.f32 %v596, %v597
        %599 = vadd.xlane.f32.xlu0 %v598
        %v600 = vpop.xlane.xlu0 %599
        %v601 = vrot.slane %v600, 4
        %v602 = vadd.f32 %v600, %v601
        %v603 = vrot.slane %v602, 2
        %v604 = vadd.f32 %v602, %v603
        %v605 = vrot.slane %v604, 1
        %v606 = vadd.f32 %v604, %v605
        %s607 = vtos %v606
        %v608 = vstv %s607
        %v609 = vadd.f32 %v574, %v608
        %vm610 = vcmask 0
        %611 = vst.msk [vmem:[#allocation2] sm:$0x1] %vm610, %v609
        // Predicated region
        $region53: #{tpu_custom_call.1} parent=35 // pred_check
          %p612 = pneg %p315
        $region54: #{tpu_custom_call.1} parent=35 // pred_check_branch
          %614 = sbr.rel (%p612) target = $region56
        $region55: #{tpu_custom_call.1} parent=35 // pred_region
          %v615 = vld [vmem:[%s274] sm:$0x3]
          %v616 = vld [vmem:[%s313] sm:$0x3]
          %v617 = vsub.f32 %v616, %v615
          %v618 = vld [vmem:[#allocation3] sm:$0x1]
          %v619 = vmul.f32 %v617, %v617
          %v621 = vlaneseq
          %v622 = vshrl.u32 %v621, 7
          %v623 = vsub.s32 0, %v622
          %v624 = vrot.slane %v619, %v623
          %v625 = vlaneseq
          %v626 = vshrl.u32 %v625, 7
          %v627 = vsub.s32 1, %v626
          %v628 = vrot.slane %v619, %v627
          %v631 = vsel %vm583, %v624, 0.0
          %v632 = vsel %vm583, %v628, 0.0
          %v633 = vadd.f32 %v631, %v632
          %634 = vadd.xlane.f32.xlu0 %v633
          %v635 = vpop.xlane.xlu0 %634
          %v636 = vrot.slane %v635, 4
          %v637 = vadd.f32 %v635, %v636
          %v638 = vrot.slane %v637, 2
          %v639 = vadd.f32 %v637, %v638
          %v640 = vrot.slane %v639, 1
          %v641 = vadd.f32 %v639, %v640
          %s642 = vtos %v641
          %v643 = vstv %s642
          %v644 = vadd.f32 %v618, %v643
          %645 = vst.msk [vmem:[#allocation3] sm:$0x1] %vm610, %v644
        $region56: #{tpu_custom_call.1} parent=35 // pred_fallthru
          _
        %p646 = scmp.eq.s32.totalorder %s26, 1
        %p647 = scmp.eq.s32.totalorder %s27, 1
        %p648 = pnand %p646, %p647
        %p649 = pneg %p648
        // Predicated region
        $region57: #{tpu_custom_call.1} parent=35 // pred_check
          _
        $region58: #{tpu_custom_call.1} parent=35 // pred_check_branch
          %651 = sbr.rel (%p648) target = $region60
        $region59: #{tpu_custom_call.1} parent=35 // pred_region
          %v652 = vld [vmem:[#allocation2] sm:$0x1]
          %v653 = vrcp.pop 4096.0
          %v654 = vmul.f32 %v652, %v653
          %v655 = vld [vmem:[#allocation3] sm:$0x1]
          %v656 = vrcp.pop 512.0
          %v657 = vmul.f32 %v655, %v656
          %v658 = vmul.f32 %v657, 1.25
          %v659 = vadd.f32 %v654, %v658
          %660 = vst.msk [vmem:[#allocation10] sm:$0x1] %vm610, %v659
        $region60: #{tpu_custom_call.1} parent=35 // pred_fallthru
          _
        // Predicated region
        $region61: #{tpu_custom_call.1} parent=35 // pred_check
          %p661 = pneg %p155
        $region62: #{tpu_custom_call.1} parent=35 // pred_check_branch
          %663 = sbr.rel (%p661) target = $region64
        $region63: #{tpu_custom_call.1} parent=35 // pred_region
          %s665 = ssub.s32 16, 16
          %666 = vsyncadd [#allocation6], %s665
          %s668 = sshll.u32 [#allocation10], 4
          %s669 = int_to_ptr.vmem [resolvable:$true] %s668
          %671 = dma.vmem_to_hbm [thread:$0]  %s669, 16, %s4, [#allocation6]
        $region64: #{tpu_custom_call.1} parent=35 // pred_fallthru
          _
        // Predicated region
        $region65: #{tpu_custom_call.1} parent=35 // pred_check
          %p672 = pneg %p155
        $region66: #{tpu_custom_call.1} parent=35 // pred_check_branch
          %674 = sbr.rel (%p672) target = $region68
        $region67: #{tpu_custom_call.1} parent=35 // pred_region
          %675 = dma.done [#allocation6], 16
        $region68: #{tpu_custom_call.1} parent=35 // pred_fallthru
          _
      $region36: #{tpu_custom_call.1} parent=5 // pred_fallthru
        _
      %p676 = scmp.le.s32.totalorder 2, %s17
      // Predicated region
      $region69: #{tpu_custom_call.1} parent=5 // pred_check
        %p677 = pneg %p676
      $region70: #{tpu_custom_call.1} parent=5 // pred_check_branch
        %679 = sbr.rel (%p677) target = $region72
      $region71: #{tpu_custom_call.1} parent=5 // pred_region
        %s680 = ssub.s32 %s17, 2
      $region72: #{tpu_custom_call.1} parent=5 // pred_fallthru
        _
    $region6: #{tpu_custom_call.1} parent=1 // loop_footer
      %s21 = sadd.s32 1, %s17
    $region7: #{tpu_custom_call.1} parent=1 // loop_footer_branch
      %16 = sbr.rel target = $region3
    $region8: #{tpu_custom_call.1} parent=1 // loop_exit
      _
    %681 = vsyncpa [#allocation5], 1
    %s682 = scalar_lea.sflag [#allocation5], 1
    %683 = vsyncpa %s682, 1
    %684 = vsyncpa [#allocation8], 1
    %s685 = scalar_lea.sflag [#allocation8], 1
    %686 = vsyncpa %s685, 1
    %687 = vsyncpa [#allocation6], 1
    %s688 = scalar_lea.sflag [#allocation6], 1
    %689 = vsyncpa %s688, 1

</llo_original>
